<compile_context>
chip_gen: v5e
topology: v5e:2x2
jax: 0.10.0
libtpu: 0.0.40
codegen_flags: <defaults>
</compile_context>

<pallas_src>
import math

import jax
import jax.numpy as jnp
import numpy as np
from jax.experimental import pallas as pl
from jax.experimental.pallas import tpu as pltpu


def _round_up(a, b):
    return (a + b - 1) // b * b


def _vmem_config():
    """Return (buffer_budget_bytes, vmem_limit_bytes) per TPU generation."""
    phys = None
    try:
        info = pltpu.get_tpu_info()
        for name in ("vmem_capacity_bytes", "vmem_bytes", "vmem_size_bytes"):
            v = getattr(info, name, None)
            if v:
                phys = int(v)
                break
    except Exception:
        phys = None
    if phys is None:
        phys = 64 * 1024 * 1024            # conservative: assume v7x-sized VMEM
    if phys >= 96 * 1024 * 1024:           # v5e / v6e: 128 MiB physical VMEM
        return 44 * 1024 * 1024, 96 * 1024 * 1024
    # v7x: 64 MiB per TC -> keep 2-deep in+out pipelining under ~28 MiB.
    return 14 * 1024 * 1024, 48 * 1024 * 1024


def _make_flat_kernel(W, H_eff, crop_top, pad_top, pad_bottom, dtype):
    """(tb, H*W) -> (tb, H_out*W) when the width is unchanged.

    The lane axis holds a whole flattened plane, so every store is lane-dense;
    top/bottom padding is just two contiguous zero runs.  Each output element
    is written exactly once."""
    lo = pad_top * W
    hi = lo + H_eff * W
    src_lo = crop_top * W
    src_hi = src_lo + H_eff * W

    def kernel(x_ref, o_ref):
        tb = o_ref.shape[0]
        o_ref[:, lo:hi] = x_ref[:, src_lo:src_hi]
        if pad_top:
            o_ref[:, :lo] = jnp.zeros((tb, lo), dtype)
        if pad_bottom:
            o_ref[:, hi:] = jnp.zeros((tb, o_ref.shape[1] - hi), dtype)

    return kernel


def _make_padded_rows_kernel(H_eff, W_eff, crop_top, crop_left,
                             pad_top, pad_bottom, pad_left, pad_right, dtype):
    """(tb, H, W) -> (tb, H_out, W_out) when the width changes.

    Builds the W-padded row block in registers (zero concat on the lane axis)
    and stores it with one full-W_out-wide store; only the top/bottom
    full-width strips are zeroed separately.  No width-1 strip stores."""

    def kernel(x_ref, o_ref):
        tb, _, W_out = o_ref.shape
        # In-kernel crop (handles F.pad's negative-padding semantics) — a view
        # slice of the already-resident VMEM tile, no extra HBM traffic.
        x = x_ref[:, crop_top:crop_top + H_eff, crop_left:crop_left + W_eff]
        parts = []
        if pad_left:
            parts.append(jnp.zeros((tb, H_eff, pad_left), dtype))
        parts.append(x)
        if pad_right:
            parts.append(jnp.zeros((tb, H_eff, pad_right), dtype))
        rows = jnp.concatenate(parts, axis=2) if len(parts) > 1 else x
        o_ref[:, pad_top:pad_top + H_eff, :] = rows
        if pad_top:
            o_ref[:, :pad_top, :] = jnp.zeros((tb, pad_top, W_out), dtype)
        if pad_bottom:
            o_ref[:, pad_top + H_eff:, :] = jnp.zeros((tb, pad_bottom, W_out), dtype)

    return kernel


def pad_same_conv2d(x, kernel_size, stride=1, *, max_planes_per_step=None):
    """JAX/Pallas equivalent of PadSameConv2d.forward for NCHW input."""
    if isinstance(kernel_size, (tuple, list)):
        ky, kx = kernel_size[0], kernel_size[1]
    else:
        ky = kx = kernel_size
    if isinstance(stride, (tuple, list)):
        sy, sx = stride[0], stride[1]
    else:
        sy = sx = stride

    N, C, H, W = x.shape
    pad_y = (sy * (math.ceil(H / sy) - 1) + ky - H) / 2
    pad_x = (sx * (math.ceil(W / sx) - 1) + kx - W) / 2
    pad_top, pad_bottom = math.floor(pad_y), math.ceil(pad_y)
    pad_left, pad_right = math.floor(pad_x), math.ceil(pad_x)

    # Negative padding (kernel_size < stride) means cropping, like F.pad.
    crop_top, crop_bottom = max(0, -pad_top), max(0, -pad_bottom)
    crop_left, crop_right = max(0, -pad_left), max(0, -pad_right)
    pad_top, pad_bottom = max(0, pad_top), max(0, pad_bottom)
    pad_left, pad_right = max(0, pad_left), max(0, pad_right)

    if not (pad_top or pad_bottom or pad_left or pad_right
            or crop_top or crop_bottom or crop_left or crop_right):
        return x  # identity

    H_eff = H - crop_top - crop_bottom
    W_eff = W - crop_left - crop_right
    H_out = H_eff + pad_top + pad_bottom
    W_out = W_eff + pad_left + pad_right
    NC = N * C
    itemsize = jnp.dtype(x.dtype).itemsize
    pack = max(1, 4 // itemsize)          # sub-32-bit dtypes pack along sublanes
    sub = 8 * pack

    width_unchanged = (pad_left == 0 and pad_right == 0
                       and crop_left == 0 and crop_right == 0)

    buffer_budget, vmem_limit = _vmem_config()

    if width_unchanged:
        # Lane-dense path: flattened planes (contiguous reshape, free in XLA).
        L_in, L_out = H * W, H_out * W
        x_ops = x.reshape(NC, L_in)
        per_plane = (_round_up(L_in, 128) + _round_up(L_out, 128)) * itemsize
        kernel = _make_flat_kernel(W, H_eff, crop_top, pad_top, pad_bottom, x.dtype)
        out_shape = jax.ShapeDtypeStruct((NC, L_out), x.dtype)
    else:
        x_ops = x.reshape(NC, H, W)
        per_plane = (_round_up(H, sub) * _round_up(W, 128)
                     + _round_up(H_out, sub) * _round_up(W_out, 128)) * itemsize
        kernel = _make_padded_rows_kernel(H_eff, W_eff, crop_top, crop_left,
                                          pad_top, pad_bottom, pad_left,
                                          pad_right, x.dtype)
        out_shape = jax.ShapeDtypeStruct((NC, H_out, W_out), x.dtype)

    # ---- planes per grid step (tb) from the generation-aware VMEM budget ----
    tb = max(1, buffer_budget // (2 * per_plane))   # x2: double-buffered pipeline
    tb = min(tb, NC)
    if max_planes_per_step is not None:
        tb = max(1, min(tb, int(max_planes_per_step)))

    # 2-way split so multi-TC chips can shard the 'parallel' axis, but only if
    # each step still moves >= ~2 MiB (single-TC chips then barely notice the
    # extra ~0.35 us step, and in/out DMAs get cross-step overlap).
    bytes_per_plane = (H * W + H_out * W_out) * itemsize
    if (max_planes_per_step is None and tb == NC and NC >= 2
            and (NC // 2) * bytes_per_plane >= 2 * 1024 * 1024):
        tb = pl.cdiv(NC, 2)

    if width_unchanged and tb < NC and tb % 8 != 0:
        # 2-D blocks: second-to-last block dim must be a multiple of 8
        # (or the full extent) to satisfy the (8, 128) layout rule.
        tb = min(NC, max(8, (tb // 8) * 8))

    grid_n = pl.cdiv(NC, tb)

    if width_unchanged:
        in_spec = pl.BlockSpec((tb, L_in), lambda i: (i, 0))
        out_spec = pl.BlockSpec((tb, L_out), lambda i: (i, 0))
    else:
        # Last two block dims equal the full array dims -> (8,128) rule is met.
        in_spec = pl.BlockSpec((tb, H, W), lambda i: (i, 0, 0))
        out_spec = pl.BlockSpec((tb, H_out, W_out), lambda i: (i, 0, 0))

    out = pl.pallas_call(
        kernel,
        out_shape=out_shape,
        grid=(grid_n,),
        in_specs=[in_spec],
        out_specs=out_spec,
        compiler_params=pltpu.CompilerParams(
            dimension_semantics=("parallel",),
            vmem_limit_bytes=vmem_limit,
        ),
    )(x_ops)

    return out.reshape(N, C, H_out, W_out)


def _ref_pad_same(x, kernel_size, stride):
    """Pure-JAX reference mirroring F.pad semantics (incl. negative padding)."""
    if isinstance(kernel_size, (tuple, list)):
        ky, kx = kernel_size[0], kernel_size[1]
    else:
        ky = kx = kernel_size
    if isinstance(stride, (tuple, list)):
        sy, sx = stride[0], stride[1]
    else:
        sy = sx = stride
    N, C, H, W = x.shape
    pad_y = (sy * (math.ceil(H / sy) - 1) + ky - H) / 2
    pad_x = (sx * (math.ceil(W / sx) - 1) + kx - W) / 2
    pt, pb = math.floor(pad_y), math.ceil(pad_y)
    pleft, pr = math.floor(pad_x), math.ceil(pad_x)
    ct, cb = max(0, -pt), max(0, -pb)
    cl, cr = max(0, -pleft), max(0, -pr)
    xc = x[:, :, ct:H - cb, cl:W - cr]
    return jnp.pad(xc, ((0, 0), (0, 0),
                        (max(0, pt), max(0, pb)),
                        (max(0, pleft), max(0, pr))))


if __name__ == "__main__":
    key = jax.random.PRNGKey(0)
    N, C, H, W = 2, 4, 16, 16
    x = jax.random.normal(key, (N, C, H, W), dtype=jnp.float32)

    cases = [
        # (kernel_size, stride, max_planes_per_step)
        (3, 2, None),        # asymmetric pad on both axes -> in-register row pad path
        ((3, 1), 1, None),   # H pad only -> lane-dense flattened path
        (3, 2, 3),           # NC % tb != 0 -> ragged last block
        (1, 2, None),        # negative padding -> in-kernel crop
    ]
    for ksz, strd, mpps in cases:
        out = jax.block_until_ready(
            pad_same_conv2d(x, ksz, strd, max_planes_per_step=mpps))
        ref = _ref_pad_same(x, ksz, strd)
        assert out.shape == ref.shape, (ksz, strd, out.shape, ref.shape)
        np.testing.assert_array_equal(np.asarray(out), np.asarray(ref))

    print("KERNEL_OK")
</pallas_src>

<mosaic_0001>
module attributes {stable_mosaic.version = 11 : i64} {
  func.func @kernel(%arg0: i32, %arg1: memref<8x16x16xf32, #tpu.memory_space<vmem>>, %arg2: memref<8x17x17xf32, #tpu.memory_space<vmem>>) attributes {dimension_semantics = [#tpu.dimension_semantics<parallel>], iteration_bounds = array<i64: 1>, scalar_prefetch = 0 : i64, scratch_operands = 0 : i64, tpu.core_type = #tpu.core_type<tc>, window_params = [{transform_indices = @transform_0, window_bounds = array<i64: 8, 16, 16>}, {transform_indices = @transform_1, window_bounds = array<i64: 8, 17, 17>}]} {
    %c0 = arith.constant 0 : index
    %c0_0 = arith.constant 0 : index
    %c0_1 = arith.constant 0 : index
    %0 = vector.load %arg1[%c0, %c0_0, %c0_1] : memref<8x16x16xf32, #tpu.memory_space<vmem>>, vector<8x16x16xf32>
    %cst = arith.constant 0.000000e+00 : f32
    %1 = vector.broadcast %cst : f32 to vector<8x16x1xf32>
    %2 = tpu.concatenate %0, %1 in 2 : vector<8x16x16xf32>, vector<8x16x1xf32> -> vector<8x16x17xf32>
    %c0_2 = arith.constant 0 : index
    %c0_3 = arith.constant 0 : index
    %c0_4 = arith.constant 0 : index
    %3 = vector.load %arg2[%c0_2, %c0_3, %c0_4] : memref<8x17x17xf32, #tpu.memory_space<vmem>>, vector<8x16x17xf32>
    tpu.vector_store %arg2[%c0_2, %c0_3, %c0_4], %2 {strides = array<i32>} : memref<8x17x17xf32, #tpu.memory_space<vmem>>, vector<8x16x17xf32>,
    %cst_5 = arith.constant 0.000000e+00 : f32
    %4 = vector.broadcast %cst_5 : f32 to vector<8x1x17xf32>
    %c0_6 = arith.constant 0 : index
    %c16 = arith.constant 16 : index
    %c0_7 = arith.constant 0 : index
    %5 = vector.load %arg2[%c0_6, %c16, %c0_7] : memref<8x17x17xf32, #tpu.memory_space<vmem>>, vector<8x1x17xf32>
    tpu.vector_store %arg2[%c0_6, %c16, %c0_7], %4 {strides = array<i32>} : memref<8x17x17xf32, #tpu.memory_space<vmem>>, vector<8x1x17xf32>,
    return
  }
  func.func @transform_0(%arg0: i32) -> (i32, i32, i32) {
    %c0_i32 = arith.constant 0 : i32
    %c0_i32_0 = arith.constant 0 : i32
    %c0_i32_1 = arith.constant 0 : i32
    return %arg0, %c0_i32, %c0_i32_0 : i32, i32, i32
  }
  func.func @transform_1(%arg0: i32) -> (i32, i32, i32) {
    %c0_i32 = arith.constant 0 : i32
    %c0_i32_0 = arith.constant 0 : i32
    %c0_i32_1 = arith.constant 0 : i32
    return %arg0, %c0_i32, %c0_i32_0 : i32, i32, i32
  }
}

</mosaic_0001>

<llo_original>
// kernel: tpu_custom_call.1
$region0: #{tpu_custom_call.1}
  #allocation0 [shape = 'u32[]', space=smem, size = 0x4, offset = 0x4, fixed_abs, tag = 'smem constant byte address 0x4 - core index']
  #allocation1 [shape = 'u32[72,128]{1,0:T(1,128)}', space=vmem, size = 0x9000, scoped, tag = 'internal scratch']
  %s0 = inlined_call_operand.hbm [shape: f32[8,16,16], index: 0, kind: input, shape index: {}]
  %s1 = inlined_call_operand.vmem [shape: f32[8,17,17], index: 1, kind: output, shape index: {}]
  %s2 = sld [smem:[#allocation0]]
  $region18: #{tpu_custom_call.1} parent=0
    _
  %s4 = ssub.s32 1, %s2
  %s5 = scalar_select 0, %s4, %s2
  $region1: #{tpu_custom_call.1} parent=0
    #allocation2 [shape = 'u8[65536]{0}', space=vmem, size = 0x10000, scoped, tag = 'input window, operand 0, single buffered']
    #allocation3 [shape = 's32[1]{0}', space=sflag, size = 0x4, scoped, tag = 'scoped memory for tpu_custom_call.1']
    %6 = vsyncpa [#allocation3], 0
    // Predicated region
    $region2: #{tpu_custom_call.1} parent=1 // pred_check
      _
    $region3: #{tpu_custom_call.1} parent=1 // pred_check_branch
      %8 = sbr.rel (0) target = $region5
    $region4: #{tpu_custom_call.1} parent=1 // pred_region
      %10 = vsyncadd [#allocation3], 0
      %s11 = sshll.u32 %s0, 4
      %s12 = int_to_ptr.hbm [resolvable:$true] %s11
      %s13 = sshll.u32 [#allocation2], 4
      %s14 = int_to_ptr.vmem [resolvable:$true] %s13
      %19 = dma.hbm_to_vmem [thread:$0]  %s12, 2048, %s14, [#allocation3], 128, 128, 8
    $region5: #{tpu_custom_call.1} parent=1 // pred_fallthru
      _
    // Predicated region
    $region6: #{tpu_custom_call.1} parent=1 // pred_check
      _
    $region7: #{tpu_custom_call.1} parent=1 // pred_check_branch
      %21 = sbr.rel (0) target = $region9
    $region8: #{tpu_custom_call.1} parent=1 // pred_region
      %23 = dma.done [#allocation3], 2048
    $region9: #{tpu_custom_call.1} parent=1 // pred_fallthru
      _
    %v24 = vld [vmem:[#allocation2] sm:$0xff]
    %v25 = vld [vmem:[#allocation2 + $0x8] sm:$0xff]
    %v26 = vld [vmem:[#allocation2 + $0x10] sm:$0xff]
    %v27 = vld [vmem:[#allocation2 + $0x18] sm:$0xff]
    %v28 = vld [vmem:[#allocation2 + $0x20] sm:$0xff]
    %v29 = vld [vmem:[#allocation2 + $0x28] sm:$0xff]
    %v30 = vld [vmem:[#allocation2 + $0x30] sm:$0xff]
    %v31 = vld [vmem:[#allocation2 + $0x38] sm:$0xff]
    %v32 = vld [vmem:[#allocation2 + $0x40] sm:$0xff]
    %v33 = vld [vmem:[#allocation2 + $0x48] sm:$0xff]
    %v34 = vld [vmem:[#allocation2 + $0x50] sm:$0xff]
    %v35 = vld [vmem:[#allocation2 + $0x58] sm:$0xff]
    %v36 = vld [vmem:[#allocation2 + $0x60] sm:$0xff]
    %v37 = vld [vmem:[#allocation2 + $0x68] sm:$0xff]
    %v38 = vld [vmem:[#allocation2 + $0x70] sm:$0xff]
    %v39 = vld [vmem:[#allocation2 + $0x78] sm:$0xff]
    %vm40 = vcmask 130048
    %v41 = vsel %vm40, %v24, 0.0
    %v42 = vsel %vm40, %v25, 0.0
    %v43 = vsel %vm40, %v26, 0.0
    %v44 = vsel %vm40, %v27, 0.0
    %v45 = vsel %vm40, %v28, 0.0
    %v46 = vsel %vm40, %v29, 0.0
    %v47 = vsel %vm40, %v30, 0.0
    %v48 = vsel %vm40, %v31, 0.0
    %v49 = vsel %vm40, %v32, 0.0
    %v50 = vsel %vm40, %v33, 0.0
    %v51 = vsel %vm40, %v34, 0.0
    %v52 = vsel %vm40, %v35, 0.0
    %v53 = vsel %vm40, %v36, 0.0
    %v54 = vsel %vm40, %v37, 0.0
    %v55 = vsel %vm40, %v38, 0.0
    %v56 = vsel %vm40, %v39, 0.0
    %vm57 = vcmask 138240
    %58 = vst.msk [vmem:[%s1] sm:$0xff] %vm57, %v41
    %59 = vst.msk [vmem:[%s1 + $0x8] sm:$0xff] %vm57, %v42
    %60 = vst.msk [vmem:[%s1 + $0x18] sm:$0xff] %vm57, %v43
    %61 = vst.msk [vmem:[%s1 + $0x20] sm:$0xff] %vm57, %v44
    %62 = vst.msk [vmem:[%s1 + $0x30] sm:$0xff] %vm57, %v45
    %63 = vst.msk [vmem:[%s1 + $0x38] sm:$0xff] %vm57, %v46
    %64 = vst.msk [vmem:[%s1 + $0x48] sm:$0xff] %vm57, %v47
    %65 = vst.msk [vmem:[%s1 + $0x50] sm:$0xff] %vm57, %v48
    %66 = vst.msk [vmem:[%s1 + $0x60] sm:$0xff] %vm57, %v49
    %67 = vst.msk [vmem:[%s1 + $0x68] sm:$0xff] %vm57, %v50
    %68 = vst.msk [vmem:[%s1 + $0x78] sm:$0xff] %vm57, %v51
    %69 = vst.msk [vmem:[%s1 + $0x80] sm:$0xff] %vm57, %v52
    %70 = vst.msk [vmem:[%s1 + $0x90] sm:$0xff] %vm57, %v53
    %71 = vst.msk [vmem:[%s1 + $0x98] sm:$0xff] %vm57, %v54
    %72 = vst.msk [vmem:[%s1 + $0xa8] sm:$0xff] %vm57, %v55
    %73 = vst.msk [vmem:[%s1 + $0xb0] sm:$0xff] %vm57, %v56
    %vm74 = vcmask 131072
    %75 = vst.msk [vmem:[%s1 + $0x10] sm:$0x1] %vm74, 0.0
    %76 = vst.msk [vmem:[%s1 + $0x28] sm:$0x1] %vm74, 0.0
    %77 = vst.msk [vmem:[%s1 + $0x40] sm:$0x1] %vm74, 0.0
    %78 = vst.msk [vmem:[%s1 + $0x58] sm:$0x1] %vm74, 0.0
    %79 = vst.msk [vmem:[%s1 + $0x70] sm:$0x1] %vm74, 0.0
    %80 = vst.msk [vmem:[%s1 + $0x88] sm:$0x1] %vm74, 0.0
    %81 = vst.msk [vmem:[%s1 + $0xa0] sm:$0x1] %vm74, 0.0
    %82 = vst.msk [vmem:[%s1 + $0xb8] sm:$0x1] %vm74, 0.0
    // Predicated region
    $region10: #{tpu_custom_call.1} parent=1 // pred_check
      _
    $region11: #{tpu_custom_call.1} parent=1 // pred_check_branch
      %84 = sbr.rel (0) target = $region13
    $region12: #{tpu_custom_call.1} parent=1 // pred_region
      _
    $region13: #{tpu_custom_call.1} parent=1 // pred_fallthru
      _
    // Predicated region
    $region14: #{tpu_custom_call.1} parent=1 // pred_check
      _
    $region15: #{tpu_custom_call.1} parent=1 // pred_check_branch
      %86 = sbr.rel (0) target = $region17
    $region16: #{tpu_custom_call.1} parent=1 // pred_region
      _
    $region17: #{tpu_custom_call.1} parent=1 // pred_fallthru
      _
    %87 = vsyncpa [#allocation3], 1

</llo_original>
